<compile_context>
chip_gen: v7x
topology: tpu7x:2x2x1
jax: 0.10.0
libtpu: 0.0.40
codegen_flags: <defaults>
</compile_context>

<pallas_src>
import functools

import jax
import jax.numpy as jnp
from jax.experimental import pallas as pl
from jax.experimental.pallas import tpu as pltpu


# --------------------------------------------------------------------------
# Kernels
# --------------------------------------------------------------------------
def _l1norm_kernel(x_ref, o_ref):
    # (tile_rows, D) tile; normalize over dim=-1.
    # f32 accumulation for the sum (matters for bf16 inputs) WITHOUT a live
    # full-tile f32 temp; second pass re-reads the tile in native dtype.
    s = jnp.sum(x_ref[...], axis=-1, keepdims=True, dtype=jnp.float32)
    inv = 1.0 / s                                    # per-row reciprocal only
    o_ref[...] = (x_ref[...] * inv).astype(o_ref.dtype)


def _l1norm_dim_minus2_kernel(x_ref, o_ref):
    # (1, R, tile_c) tile; normalize over axis=-2 (sublane reduce) so
    # dim == ndim-2 needs no transpose round trip.
    s = jnp.sum(x_ref[...], axis=-2, keepdims=True, dtype=jnp.float32)
    o_ref[...] = (x_ref[...] * (1.0 / s)).astype(o_ref.dtype)


def _rowsum_kernel(x_ref, s_ref, *, d_total, tile_d, needs_mask):
    # Pass 1 of the D-chunked scheme: accumulate f32 row sums over D chunks.
    k = pl.program_id(1)

    @pl.when(k == 0)
    def _():
        s_ref[...] = jnp.zeros_like(s_ref)

    x = x_ref[...]
    if needs_mask:
        # Tail D-chunk reads undefined padding lanes -> zero them before summing.
        col = jax.lax.broadcasted_iota(jnp.int32, x.shape, 1) + k * tile_d
        x = jnp.where(col < d_total, x, jnp.zeros_like(x))
    s_ref[...] += jnp.sum(x, axis=-1, keepdims=True, dtype=jnp.float32)


def _div_kernel(x_ref, s_ref, o_ref):
    # Pass 2 of the D-chunked scheme: broadcast multiply by 1/rowsum.
    inv = 1.0 / s_ref[...]
    o_ref[...] = (x_ref[...] * inv).astype(o_ref.dtype)


# --------------------------------------------------------------------------
# Generation-aware sizing helpers
# --------------------------------------------------------------------------
def _tpu_vmem_and_cores():
    vmem_cap = 128 << 20
    try:
        info = pltpu.get_tpu_info()
        vmem_cap = int(getattr(info, "vmem_capacity_bytes", vmem_cap))
    except Exception:
        pass
    # v7x exposes 64 MiB per TensorCore and has 2 TCs/chip; v5e/v6e have
    # 128 MiB and one TC.
    num_cores = 2 if vmem_cap <= (64 << 20) else 1
    return vmem_cap, num_cores


def _target_block_bytes(vmem_cap):
    # Biggest block that comfortably double-buffers: ~8 MiB on v7x (per-step
    # overhead is relatively expensive at 3.2 TB/s), ~4 MiB on v5e/v6e.
    return (8 << 20) if vmem_cap <= (64 << 20) else (4 << 20)


def _vmem_limit(block_bytes, vmem_cap):
    # 2x (in + out) double-buffered blocks + headroom, capped ~16 MiB below
    # physical VMEM so Mosaic internal scratch always fits.
    cap = max(32 << 20, vmem_cap - (16 << 20))
    return int(min(max(4 * block_bytes + (4 << 20), 16 << 20), cap))


def _pick_tile_rows(rows, d, itemsize, target_bytes, max_block_bytes, num_cores):
    """Sublane-aligned row-tile size targeting ~target_bytes per block."""
    cdiv = lambda a, b: -(-a // b)
    align = max(8, 32 // max(1, itemsize))           # 8 f32 / 16 bf16 / 32 int8
    row_bytes = max(1, d * itemsize)

    tr = max(align, (target_bytes // row_bytes) // align * align)
    tr = min(tr, max(align, (max_block_bytes // row_bytes) // align * align))
    rows_aligned = cdiv(rows, align) * align
    tr = min(tr, rows_aligned)

    # Enough steps to overlap in-DMA / compute / out-DMA (and feed both cores
    # on 2-TC parts), but never shrink a block below ~1 MiB: the ~0.35us/step
    # overhead would dominate at the HBM roofline.
    min_steps = 2 * num_cores if num_cores > 1 else 4
    floor_bytes = 1 << 20
    if rows > min_steps * align and cdiv(rows, tr) < min_steps:
        tr_split = max(align, (rows // min_steps) // align * align)
        if tr_split * row_bytes >= floor_bytes:
            tr = tr_split

    # 2-TC parts: prefer an even step count so neither core idles on the tail.
    if num_cores > 1:
        steps = cdiv(rows, tr)
        if steps > 1 and steps % 2 == 1:
            tr_even = max(align, cdiv(cdiv(rows, steps + 1), align) * align)
            if (cdiv(rows, tr_even) % 2 == 0
                    and tr_even * row_bytes >= min(floor_bytes, tr * row_bytes)):
                tr = tr_even
    return tr


# --------------------------------------------------------------------------
# Wrappers
# --------------------------------------------------------------------------
def _l1_norm_chunked(x2, tile_rows, tile_d, vmem_limit):
    """Two-pass (row-sum, then divide) scheme for rows too wide for one block."""
    rows, D = x2.shape
    row_tiles = pl.cdiv(rows, tile_rows)
    d_chunks = pl.cdiv(D, tile_d)
    needs_mask = (D % tile_d) != 0

    sums = pl.pallas_call(
        functools.partial(_rowsum_kernel, d_total=D, tile_d=tile_d,
                          needs_mask=needs_mask),
        out_shape=jax.ShapeDtypeStruct((rows, 1), jnp.float32),
        grid_spec=pltpu.PrefetchScalarGridSpec(
            num_scalar_prefetch=0,
            grid=(row_tiles, d_chunks),
            in_specs=[pl.BlockSpec((tile_rows, tile_d), lambda i, k: (i, k))],
            out_specs=pl.BlockSpec((tile_rows, 1), lambda i, k: (i, 0)),
        ),
        compiler_params=pltpu.CompilerParams(
            dimension_semantics=("parallel", "arbitrary"),
            vmem_limit_bytes=vmem_limit,
        ),
    )(x2)

    return pl.pallas_call(
        _div_kernel,
        out_shape=jax.ShapeDtypeStruct((rows, D), x2.dtype),
        grid_spec=pltpu.PrefetchScalarGridSpec(
            num_scalar_prefetch=0,
            grid=(row_tiles, d_chunks),
            in_specs=[pl.BlockSpec((tile_rows, tile_d), lambda i, k: (i, k)),
                      pl.BlockSpec((tile_rows, 1), lambda i, k: (i, 0))],
            out_specs=pl.BlockSpec((tile_rows, tile_d), lambda i, k: (i, k)),
        ),
        compiler_params=pltpu.CompilerParams(
            dimension_semantics=("parallel", "parallel"),
            vmem_limit_bytes=vmem_limit,
        ),
    )(x2, sums)


def _l1_norm_dim_minus2(x, vmem_cap, target_bytes, max_block_bytes):
    """Native dim == ndim-2 path: sublane reduce, no transpose round trip."""
    orig_shape = x.shape
    R, C = orig_shape[-2], orig_shape[-1]
    B = 1
    for s in orig_shape[:-2]:
        B *= s
    x3 = x.reshape(B, R, C)
    itemsize = jnp.dtype(x3.dtype).itemsize

    if R * C * itemsize <= target_bytes:
        tile_c = C
    else:
        tile_c = max(128, (target_bytes // max(1, R * itemsize)) // 128 * 128)
        if tile_c >= C:
            tile_c = C
    block_bytes = R * tile_c * itemsize
    grid = (B, pl.cdiv(C, tile_c))

    out = pl.pallas_call(
        _l1norm_dim_minus2_kernel,
        out_shape=jax.ShapeDtypeStruct((B, R, C), x3.dtype),
        grid_spec=pltpu.PrefetchScalarGridSpec(
            num_scalar_prefetch=0,
            grid=grid,
            in_specs=[pl.BlockSpec((1, R, tile_c), lambda b, c: (b, 0, c))],
            out_specs=pl.BlockSpec((1, R, tile_c), lambda b, c: (b, 0, c)),
        ),
        compiler_params=pltpu.CompilerParams(
            dimension_semantics=("parallel", "parallel"),
            vmem_limit_bytes=_vmem_limit(block_bytes, vmem_cap),
        ),
    )(x3)
    return out.reshape(orig_shape)


def l1_norm(x: jax.Array, *, n: float = 1.0, dim: int = -1) -> jax.Array:
    """Pallas equivalent of L1Norm.forward: x / x.sum(dim, keepdim=True).

    `n` is stored-but-unused in the PyTorch module; kept for signature parity.
    Rows whose sum is exactly zero produce Inf/NaN, matching the reference
    (which has no eps and no abs).
    """
    del n  # unused in the reference forward

    ndim = x.ndim
    dim = dim % ndim
    itemsize = jnp.dtype(x.dtype).itemsize

    vmem_cap, num_cores = _tpu_vmem_and_cores()
    target_bytes = _target_block_bytes(vmem_cap)
    max_block_bytes = max(1 << 20, (vmem_cap - (16 << 20)) // 4)

    # ---- native dim == ndim-2 path (avoids a 3x-traffic transpose round trip)
    if ndim >= 2 and dim == ndim - 2:
        if x.shape[-2] * 128 * itemsize <= max_block_bytes:
            return _l1_norm_dim_minus2(x, vmem_cap, target_bytes, max_block_bytes)
        # else: fall through to the (chunked) last-dim path via transpose.

    perm = None
    if dim != ndim - 1:
        # TODO(synk): truly interior axes (and extremely tall dim==ndim-2 slabs)
        # still pay a transpose round trip; express them natively via a
        # sublane-reduce BlockSpec if such shapes matter in production.
        perm = tuple(i for i in range(ndim) if i != dim) + (dim,)
        x = jnp.transpose(x, perm)

    orig_shape = x.shape
    D = orig_shape[-1]
    rows = 1
    for s in orig_shape[:-1]:
        rows *= s
    x2 = x.reshape(rows, D)

    align = max(8, 32 // max(1, itemsize))
    row_bytes = D * itemsize

    if align * row_bytes > max_block_bytes:
        # Even a minimal (align, D) block would overflow VMEM: D-chunked two-pass.
        tile_rows = align
        tile_d = max(128, (target_bytes // max(1, align * itemsize)) // 128 * 128)
        block_bytes = tile_rows * tile_d * itemsize
        out = _l1_norm_chunked(x2, tile_rows, tile_d,
                               _vmem_limit(block_bytes, vmem_cap))
    else:
        tile_rows = _pick_tile_rows(rows, D, itemsize, target_bytes,
                                    max_block_bytes, num_cores)
        block_bytes = tile_rows * row_bytes
        grid = (pl.cdiv(rows, tile_rows),)           # OOB tail rows are write-masked
        out = pl.pallas_call(
            _l1norm_kernel,
            out_shape=jax.ShapeDtypeStruct((rows, D), x2.dtype),
            grid_spec=pltpu.PrefetchScalarGridSpec(
                num_scalar_prefetch=0,
                grid=grid,
                in_specs=[pl.BlockSpec((tile_rows, D), lambda i: (i, 0))],
                out_specs=pl.BlockSpec((tile_rows, D), lambda i: (i, 0)),
            ),
            compiler_params=pltpu.CompilerParams(
                dimension_semantics=("parallel",),
                vmem_limit_bytes=_vmem_limit(block_bytes, vmem_cap),
            ),
        )(x2)

    out = out.reshape(orig_shape)
    if perm is not None:
        inv_perm = [0] * ndim
        for i, p in enumerate(perm):
            inv_perm[p] = i
        out = jnp.transpose(out, inv_perm)
    return out


if __name__ == "__main__":
    key = jax.random.PRNGKey(0)
    # Small shape consistent with a generic (batch, seq, hidden) input.
    x = jax.random.uniform(key, (2, 8, 32), dtype=jnp.float32) + 0.1
    y = jax.block_until_ready(l1_norm(x))
    y_ref = x / jnp.sum(x, axis=-1, keepdims=True)
    assert y.shape == x.shape and y.dtype == x.dtype
    assert jnp.allclose(y, y_ref, atol=1e-6, rtol=1e-6)

    # Row count not a multiple of the tile (masked-tail path) and a non-128 D.
    x2 = jax.random.uniform(jax.random.PRNGKey(1), (3, 5, 160), dtype=jnp.float32) + 0.1
    y2 = jax.block_until_ready(l1_norm(x2))
    assert jnp.allclose(y2, x2 / jnp.sum(x2, axis=-1, keepdims=True), atol=1e-6, rtol=1e-6)

    # bf16 input: f32 row-sum accumulation, native-dtype second pass.
    x3 = (jax.random.uniform(jax.random.PRNGKey(2), (4, 16, 256), dtype=jnp.float32) + 0.1).astype(jnp.bfloat16)
    y3 = jax.block_until_ready(l1_norm(x3))
    y3_ref = (x3.astype(jnp.float32) / jnp.sum(x3.astype(jnp.float32), axis=-1, keepdims=True)).astype(jnp.bfloat16)
    assert y3.dtype == jnp.bfloat16
    assert jnp.allclose(y3.astype(jnp.float32), y3_ref.astype(jnp.float32), atol=2e-2, rtol=2e-2)

    # dim=-2: native sublane-reduce path (no transpose round trip).
    x4 = jax.random.uniform(jax.random.PRNGKey(3), (2, 8, 32), dtype=jnp.float32) + 0.1
    y4 = jax.block_until_ready(l1_norm(x4, dim=-2))
    assert jnp.allclose(y4, x4 / jnp.sum(x4, axis=-2, keepdims=True), atol=1e-6, rtol=1e-6)

    # Interior dim: transpose fallback.
    x5 = jax.random.uniform(jax.random.PRNGKey(4), (4, 6, 8, 16), dtype=jnp.float32) + 0.1
    y5 = jax.block_until_ready(l1_norm(x5, dim=1))
    assert jnp.allclose(y5, x5 / jnp.sum(x5, axis=1, keepdims=True), atol=1e-6, rtol=1e-6)

    # D-chunked two-pass path (tiles forced small so it runs at test scale).
    x6 = jax.random.uniform(jax.random.PRNGKey(5), (16, 320), dtype=jnp.float32) + 0.1
    y6 = jax.block_until_ready(_l1_norm_chunked(x6, tile_rows=8, tile_d=128,
                                                vmem_limit=32 << 20))
    assert jnp.allclose(y6, x6 / jnp.sum(x6, axis=-1, keepdims=True), atol=1e-6, rtol=1e-6)

    print("KERNEL_OK")
</pallas_src>

<mosaic_0001>
module attributes {stable_mosaic.version = 11 : i64} {
  func.func @_l1norm_kernel(%arg0: i32, %arg1: memref<16x32xf32, #tpu.memory_space<vmem>>, %arg2: memref<16x32xf32, #tpu.memory_space<vmem>>) attributes {dimension_semantics = [#tpu.dimension_semantics<parallel>], iteration_bounds = array<i64: 1>, scalar_prefetch = 0 : i64, scratch_operands = 0 : i64, tpu.core_type = #tpu.core_type<tc>, window_params = [{transform_indices = @transform_0, window_bounds = array<i64: 16, 32>}, {transform_indices = @transform_1, window_bounds = array<i64: 16, 32>}]} {
    %c0 = arith.constant 0 : index
    %c0_0 = arith.constant 0 : index
    %0 = vector.load %arg1[%c0, %c0_0] : memref<16x32xf32, #tpu.memory_space<vmem>>, vector<16x32xf32>
    %cst = arith.constant dense<0.000000e+00> : vector<16xf32>
    %1 = vector.multi_reduction <add>, %0, %cst [1] : vector<16x32xf32> to vector<16xf32>
    %2 = vector.shape_cast %1 : vector<16xf32> to vector<16x1xf32>
    %cst_1 = arith.constant 1.000000e+00 : f32
    %3 = vector.broadcast %cst_1 : f32 to vector<16x1xf32>
    %4 = arith.divf %3, %2 : vector<16x1xf32>
    %c0_2 = arith.constant 0 : index
    %c0_3 = arith.constant 0 : index
    %5 = vector.load %arg1[%c0_2, %c0_3] : memref<16x32xf32, #tpu.memory_space<vmem>>, vector<16x32xf32>
    %6 = vector.broadcast %4 : vector<16x1xf32> to vector<16x32xf32>
    %7 = arith.mulf %5, %6 : vector<16x32xf32>
    %c0_4 = arith.constant 0 : index
    %c0_5 = arith.constant 0 : index
    %8 = vector.load %arg2[%c0_4, %c0_5] : memref<16x32xf32, #tpu.memory_space<vmem>>, vector<16x32xf32>
    tpu.vector_store %arg2[%c0_4, %c0_5], %7 {strides = array<i32>} : memref<16x32xf32, #tpu.memory_space<vmem>>, vector<16x32xf32>,
    return
  }
  func.func @transform_0(%arg0: i32) -> (i32, i32) {
    %c0_i32 = arith.constant 0 : i32
    %c0_i32_0 = arith.constant 0 : i32
    return %arg0, %c0_i32 : i32, i32
  }
  func.func @transform_1(%arg0: i32) -> (i32, i32) {
    %c0_i32 = arith.constant 0 : i32
    %c0_i32_0 = arith.constant 0 : i32
    return %arg0, %c0_i32 : i32, i32
  }
}

</mosaic_0001>

<llo_original>
// kernel: tpu_custom_call.1
$region0: #{tpu_custom_call.1}
  #allocation0 [shape = 'u32[]', space=smem, size = 0x4, offset = 0x4, fixed_abs, tag = 'smem constant byte address 0x4 - core index']
  #allocation1 [shape = 'u32[144,128]{1,0:T(1,128)}', space=vmem, size = 0x12000, scoped, tag = 'internal scratch']
  %s0 = inlined_call_operand.hbm [shape: f32[16,32], index: 0, kind: input, shape index: {}]
  %s1 = inlined_call_operand.hbm [shape: f32[16,32], index: 1, kind: output, shape index: {}]
  %s2 = sld [smem:[#allocation0]]
  $region18: #{tpu_custom_call.1} parent=0
    _
  %s4 = ssub.s32 1, %s2
  %s5 = scalar_select 0, %s4, %s2
  $region1: #{tpu_custom_call.1} parent=0
    #allocation2 [shape = 'u8[8192]{0}', space=vmem, size = 0x2000, scoped, tag = 'input window, operand 0, single buffered']
    #allocation3 [shape = 's32[1]{0}', space=sflag, size = 0x4, scoped, tag = 'scoped memory for tpu_custom_call.1']
    #allocation4 [shape = 's32[1]{0}', space=sflag, size = 0x4, scoped, tag = 'scoped memory for tpu_custom_call.1']
    #allocation5 [shape = 'u8[8192]{0}', space=vmem, size = 0x2000, scoped, tag = 'output window, operand 0, single buffered']
    %6 = vsyncpa [#allocation3], 0
    %7 = vsyncpa [#allocation4], 0
    // Predicated region
    $region2: #{tpu_custom_call.1} parent=1 // pred_check
      _
    $region3: #{tpu_custom_call.1} parent=1 // pred_check_branch
      %9 = sbr.rel (0) target = $region5
    $region4: #{tpu_custom_call.1} parent=1 // pred_region
      %s11 = ssub.s32 256, 256
      %12 = vsyncadd [#allocation3], %s11
      %s13 = sshll.u32 [#allocation2], 4
      %s14 = int_to_ptr.vmem [resolvable:$true] %s13
      %19 = dma.hbm_to_vmem [thread:$0]  %s0, 256, %s14, [#allocation3], 128, 128, 8
    $region5: #{tpu_custom_call.1} parent=1 // pred_fallthru
      _
    // Predicated region
    $region6: #{tpu_custom_call.1} parent=1 // pred_check
      _
    $region7: #{tpu_custom_call.1} parent=1 // pred_check_branch
      %21 = sbr.rel (0) target = $region9
    $region8: #{tpu_custom_call.1} parent=1 // pred_region
      %22 = dma.done [#allocation3], 256
    $region9: #{tpu_custom_call.1} parent=1 // pred_fallthru
      _
    %v23 = vld [vmem:[#allocation2] sm:$0xff]
    %v24 = vld [vmem:[#allocation2 + $0x8] sm:$0xff]
    %vm25 = vcmask 261120
    %v26 = vsel %vm25, %v23, 0.0
    %27 = vadd.xlane.f32.xlu0 %v26
    %v28 = vpop.xlane.xlu0 %27
    %v29 = vsel %vm25, %v24, 0.0
    %30 = vadd.xlane.f32.xlu0 %v29
    %v31 = vpop.xlane.xlu0 %30
    %v32 = vrcp.pop %v28
    %v33 = vmul.f32 1.0, %v32
    %v34 = vrcp.pop %v31
    %v35 = vmul.f32 1.0, %v34
    %v36 = vmul.f32 %v23, %v33
    %v37 = vmul.f32 %v24, %v35
    %38 = vst.msk [vmem:[#allocation5] sm:$0xff] %vm25, %v36
    %39 = vst.msk [vmem:[#allocation5 + $0x8] sm:$0xff] %vm25, %v37
    // Predicated region
    $region10: #{tpu_custom_call.1} parent=1 // pred_check
      _
    $region11: #{tpu_custom_call.1} parent=1 // pred_check_branch
      %41 = sbr.rel (0) target = $region13
    $region12: #{tpu_custom_call.1} parent=1 // pred_region
      %s43 = ssub.s32 256, 256
      %44 = vsyncadd [#allocation4], %s43
      %s45 = sshll.u32 [#allocation5], 4
      %s46 = int_to_ptr.vmem [resolvable:$true] %s45
      %51 = dma.vmem_to_hbm [thread:$0]  %s46, 256, %s1, [#allocation4], 128, 128, 8
    $region13: #{tpu_custom_call.1} parent=1 // pred_fallthru
      _
    // Predicated region
    $region14: #{tpu_custom_call.1} parent=1 // pred_check
      _
    $region15: #{tpu_custom_call.1} parent=1 // pred_check_branch
      %53 = sbr.rel (0) target = $region17
    $region16: #{tpu_custom_call.1} parent=1 // pred_region
      %54 = dma.done [#allocation4], 256
    $region17: #{tpu_custom_call.1} parent=1 // pred_fallthru
      _
    %55 = vsyncpa [#allocation3], 1
    %56 = vsyncpa [#allocation4], 1

</llo_original>
